<compile_context>
chip_gen: v6e
topology: v6e:2x2x1
jax: 0.10.0
libtpu: 0.0.40
codegen_flags: <defaults>
</compile_context>

<pallas_src>
import jax
import jax.numpy as jnp
from jax.experimental import pallas as pl
from jax.experimental.pallas import tpu as pltpu


def _round_up(x, m):
    return (x + m - 1) // m * m


def iclassifier_forward(x_nchw, w_conv, b_conv):
    """IClassifier.forward: feats = feature_extractor(x); return feats.view(N, -1).

    x_nchw : (N, Cin, H, W) float32   (PyTorch layout)
    w_conv : (Cout, Cin, 3, 3) float32
    b_conv : (Cout,) float32
    returns: (N, Cout) float32
    """
    N, Cin, H, W = x_nchw.shape
    Cout = w_conv.shape[0]
    K = 3
    HW = H * W
    KKC = K * K * Cin                 # contraction dim, shipped unpadded (36)
    Cp = _round_up(Cout, 128)         # pad only the small output dim -> lane-dense
    inv_hw = 1.0 / float(HW)

    # ---- glue: NCHW -> NHWC, pad, im2col (layout plumbing, plain JAX) ----
    x = jnp.transpose(x_nchw, (0, 2, 3, 1))                     # (N, H, W, Cin)
    xp = jnp.pad(x, ((0, 0), (1, 1), (1, 1), (0, 0)))           # (N, H+2, W+2, Cin)
    slabs = [xp[:, i:i + H, j:j + W, :] for i in range(K) for j in range(K)]
    patches = jnp.stack(slabs, axis=3)                          # (N, H, W, K*K, Cin)
    patches = patches.reshape(N, HW, KKC).astype(jnp.bfloat16)  # unpadded K dim

    # conv weight (Cout, Cin, kH, kW) -> (kH, kW, Cin, Cout) -> (KKC, Cp)
    w_flat = jnp.transpose(w_conv, (2, 3, 1, 0)).reshape(KKC, Cout)
    w_flat = jnp.pad(w_flat, ((0, 0), (0, Cp - Cout))).astype(jnp.bfloat16)
    b_flat = jnp.pad(b_conv.reshape(1, Cout),
                     ((0, 0), (0, Cp - Cout))).astype(jnp.float32)

    def kernel(p_ref, w_ref, b_ref, o_ref):
        # p_ref: (1, HW, KKC) bf16   one image's im2col rows
        # w_ref: (KKC, Cp)    bf16   flattened conv weight (Cout zero-padded)
        # b_ref: (1, Cp)      f32    conv bias (zero-padded)
        # o_ref: (1, 1, Cp)   f32    pooled (flattened) features of this image
        acc = jnp.dot(p_ref[0], w_ref[...],
                      preferred_element_type=jnp.float32)        # (HW, Cp) on MXU
        acc = jnp.maximum(acc + b_ref[...], 0.0)                 # bias + ReLU (VPU)
        # Global average pool: sublane reduction over HW (XLU, hidden under the
        # matmul), then a single 1/HW scale on the pooled row.
        o_ref[0] = jnp.sum(acc, axis=0, keepdims=True) * inv_hw

    out = pl.pallas_call(
        kernel,
        out_shape=jax.ShapeDtypeStruct((N, 1, Cp), jnp.float32),
        grid_spec=pltpu.PrefetchScalarGridSpec(
            num_scalar_prefetch=0,
            grid=(N,),                                           # one image per step
            in_specs=[
                pl.BlockSpec((1, HW, KKC), lambda n: (n, 0, 0)),
                pl.BlockSpec((KKC, Cp), lambda n: (0, 0)),       # resident across steps
                pl.BlockSpec((1, Cp), lambda n: (0, 0)),
            ],
            out_specs=pl.BlockSpec((1, 1, Cp), lambda n: (n, 0, 0)),
        ),
        # Batch steps are independent -> v7x can split them across its two
        # TensorCores; patch DMA double-buffers across steps on all chips.
        compiler_params=pltpu.CompilerParams(
            dimension_semantics=("parallel",)),
    )(patches, w_flat, b_flat)

    # Drop the zero-padded channels; result is already feats.view(N, -1).
    return out.reshape(N, Cp)[:, :Cout]


def _reference(x_nchw, w_conv, b_conv):
    # Pure-JAX reference of the same synthetic feature extractor (f32).
    y = jax.lax.conv_general_dilated(
        x_nchw, w_conv, window_strides=(1, 1), padding="SAME",
        dimension_numbers=("NCHW", "OIHW", "NCHW"))
    y = y + b_conv.reshape(1, -1, 1, 1)
    y = jnp.maximum(y, 0.0)
    y = jnp.mean(y, axis=(2, 3))                                 # global avg pool
    return y.reshape(y.shape[0], -1)


if __name__ == "__main__":
    key = jax.random.PRNGKey(0)
    k_x, k_w, k_b = jax.random.split(key, 3)

    N, Cin, H, W, Cout = 2, 4, 16, 16, 32
    x = jax.random.normal(k_x, (N, Cin, H, W), dtype=jnp.float32)
    w_conv = jax.random.normal(k_w, (Cout, Cin, 3, 3), dtype=jnp.float32) * 0.1
    b_conv = jax.random.normal(k_b, (Cout,), dtype=jnp.float32) * 0.1

    feats = iclassifier_forward(x, w_conv, b_conv)
    feats = jax.block_until_ready(feats)
    assert feats.shape == (N, Cout), feats.shape

    # Tight check against a reference that applies the same bf16 rounding to the
    # matmul operands (kernel accumulates and pools in f32).
    ref_bf16 = _reference(
        x.astype(jnp.bfloat16).astype(jnp.float32),
        w_conv.astype(jnp.bfloat16).astype(jnp.float32),
        b_conv)
    assert jnp.allclose(feats, ref_bf16, atol=5e-3, rtol=5e-3), \
        "mismatch vs bf16-matched reference"

    # Loose check against the full-f32 module semantics (bf16 operand rounding only).
    ref_f32 = _reference(x, w_conv, b_conv)
    assert jnp.allclose(feats, ref_f32, atol=2e-2, rtol=2e-2), \
        "mismatch vs f32 reference"

    print("KERNEL_OK")
</pallas_src>

<mosaic_0001>
module attributes {stable_mosaic.version = 11 : i64} {
  func.func @kernel(%arg0: i32, %arg1: memref<1x256x36xbf16, #tpu.memory_space<vmem>>, %arg2: memref<36x128xbf16, #tpu.memory_space<vmem>>, %arg3: memref<1x128xf32, #tpu.memory_space<vmem>>, %arg4: memref<1x1x128xf32, #tpu.memory_space<vmem>>) attributes {dimension_semantics = [#tpu.dimension_semantics<parallel>], iteration_bounds = array<i64: 2>, scalar_prefetch = 0 : i64, scratch_operands = 0 : i64, tpu.core_type = #tpu.core_type<tc>, window_params = [{transform_indices = @transform_0, window_bounds = array<i64: 1, 256, 36>}, {pipeline_mode = #tpu.pipeline_mode<synchronous>, transform_indices = @transform_1, window_bounds = array<i64: 36, 128>}, {pipeline_mode = #tpu.pipeline_mode<synchronous>, transform_indices = @transform_2, window_bounds = array<i64: 1, 128>}, {transform_indices = @transform_3, window_bounds = array<i64: 1, 1, 128>}]} {
    %c0 = arith.constant 0 : index
    %c0_0 = arith.constant 0 : index
    %c0_1 = arith.constant 0 : index
    %0 = vector.load %arg1[%c0, %c0_0, %c0_1] : memref<1x256x36xbf16, #tpu.memory_space<vmem>>, vector<1x256x36xbf16>
    %1 = vector.shape_cast %0 : vector<1x256x36xbf16> to vector<256x36xbf16>
    %c0_2 = arith.constant 0 : index
    %c0_3 = arith.constant 0 : index
    %2 = vector.load %arg2[%c0_2, %c0_3] : memref<36x128xbf16, #tpu.memory_space<vmem>>, vector<36x128xbf16>
    %cst = arith.constant dense<0.000000e+00> : vector<256x128xf32>
    %3 = tpu.matmul %1, %2, %cst {dimension_numbers = #tpu.dot_dimension_numbers<[1], [0], [0], [1], [0, 0, 1, 1], [], []>} : vector<256x36xbf16>, vector<36x128xbf16>, vector<256x128xf32> -> vector<256x128xf32>
    %c0_4 = arith.constant 0 : index
    %c0_5 = arith.constant 0 : index
    %4 = vector.load %arg3[%c0_4, %c0_5] : memref<1x128xf32, #tpu.memory_space<vmem>>, vector<1x128xf32>
    %5 = vector.broadcast %4 : vector<1x128xf32> to vector<256x128xf32>
    %6 = arith.addf %3, %5 : vector<256x128xf32>
    %cst_6 = arith.constant 0.000000e+00 : f32
    %7 = vector.broadcast %cst_6 : f32 to vector<256x128xf32>
    %8 = arith.maximumf %6, %7 : vector<256x128xf32>
    %cst_7 = arith.constant dense<0.000000e+00> : vector<128xf32>
    %9 = vector.multi_reduction <add>, %8, %cst_7 [0] : vector<256x128xf32> to vector<128xf32>
    %10 = vector.shape_cast %9 : vector<128xf32> to vector<1x128xf32>
    %cst_8 = arith.constant 3.906250e-03 : f32
    %11 = vector.broadcast %cst_8 : f32 to vector<1x128xf32>
    %12 = arith.mulf %10, %11 : vector<1x128xf32>
    %c0_9 = arith.constant 0 : index
    %c0_10 = arith.constant 0 : index
    %c0_11 = arith.constant 0 : index
    %13 = vector.load %arg4[%c0_9, %c0_10, %c0_11] : memref<1x1x128xf32, #tpu.memory_space<vmem>>, vector<1x1x128xf32>
    %14 = vector.shape_cast %13 : vector<1x1x128xf32> to vector<1x128xf32>
    %15 = vector.shape_cast %12 : vector<1x128xf32> to vector<1x1x128xf32>
    tpu.vector_store %arg4[%c0_9, %c0_10, %c0_11], %15 {strides = array<i32>} : memref<1x1x128xf32, #tpu.memory_space<vmem>>, vector<1x1x128xf32>,
    return
  }
  func.func @transform_0(%arg0: i32) -> (i32, i32, i32) {
    %c0_i32 = arith.constant 0 : i32
    %c0_i32_0 = arith.constant 0 : i32
    %c0_i32_1 = arith.constant 0 : i32
    return %arg0, %c0_i32, %c0_i32_0 : i32, i32, i32
  }
  func.func @transform_1(%arg0: i32) -> (i32, i32) {
    %c0_i32 = arith.constant 0 : i32
    %c0_i32_0 = arith.constant 0 : i32
    %c0_i32_1 = arith.constant 0 : i32
    return %c0_i32, %c0_i32_0 : i32, i32
  }
  func.func @transform_2(%arg0: i32) -> (i32, i32) {
    %c0_i32 = arith.constant 0 : i32
    %c0_i32_0 = arith.constant 0 : i32
    %c0_i32_1 = arith.constant 0 : i32
    return %c0_i32, %c0_i32_0 : i32, i32
  }
  func.func @transform_3(%arg0: i32) -> (i32, i32, i32) {
    %c0_i32 = arith.constant 0 : i32
    %c0_i32_0 = arith.constant 0 : i32
    %c0_i32_1 = arith.constant 0 : i32
    return %arg0, %c0_i32, %c0_i32_0 : i32, i32, i32
  }
}

</mosaic_0001>

<llo_original>
// kernel: tpu_custom_call.1
$region0: #{tpu_custom_call.1}
  #allocation0 [shape = 'u32[]', space=smem, size = 0x4, offset = 0x4, fixed_abs, tag = 'smem constant byte address 0x4 - core index']
  #allocation1 [shape = 'u32[144,128]{1,0:T(1,128)}', space=vmem, size = 0x12000, scoped, tag = 'internal scratch']
  %s0 = inlined_call_operand.vmem [shape: bf16[2,256,36], index: 0, kind: input, shape index: {}]
  %s1 = inlined_call_operand.vmem [shape: bf16[36,128], index: 1, kind: input, shape index: {}]
  %s2 = inlined_call_operand.vmem [shape: f32[1,128], index: 2, kind: input, shape index: {}]
  %s3 = inlined_call_operand.hbm [shape: f32[2,1,128], index: 3, kind: output, shape index: {}]
  %s4 = sld [smem:[#allocation0]]
  $region45: #{tpu_custom_call.1} parent=0
    _
  %s6 = ssub.s32 1, %s4
  %s7 = scalar_select 0, %s6, %s4
  $region1: #{tpu_custom_call.1} parent=0
    #allocation2 [shape = 'u8[1024]{0}', space=vmem, size = 0x400, scoped, tag = 'output window, operand 0']
    #allocation3 [shape = 's32[2]{0}', space=sflag, size = 0x8, scoped, tag = 'scoped memory for tpu_custom_call.1']
    %8 = vsyncpa [#allocation3], 0
    %s9 = scalar_lea.sflag [#allocation3], 1
    %10 = vsyncpa %s9, 0
    loop: start=0, step=1, limit=4
    $region2: #{tpu_custom_call.1} parent=1 // loop_pre_header
      _
    $region3: #{tpu_custom_call.1} parent=1 // loop_header
      %s12 = sphi 0, %s16
      %p13 = scmp.ge.s32.totalorder %s12, 4
      %s22 = sphi 0, %s24
      %s25 = sphi 0, %s22
      %s26 = sphi 0, %s25
      %s42 = sphi 0, %s26
      %s46 = sphi 0, %s46
      %s48 = sphi 0, %s46
      %s49 = sphi 0, %s48
      %s63 = sphi 0, %s49
      %s67 = sphi 0, %s67
      %s69 = sphi 0, %s67
      %s70 = sphi 0, %s69
      %s84 = sphi 0, %s70
      %s90 = sphi 0, %s92
      %s93 = sphi 0, %s90
      %s94 = sphi 0, %s93
      %s110 = sphi 0, %s94
    $region4: #{tpu_custom_call.1} parent=1 // loop_header_branch
      %15 = sbr.rel (%p13) target = $region8
    $region5: #{tpu_custom_call.1} parent=1 // loop_body
      %s17 = ssub.s32 %s12, 1
      %s18 = ssub.s32 %s12, 2
      %s19 = sadd.s32 %s12, 1
      %s20 = ssub.s32 %s12, %s19
      %p21 = scmp.eq.s32.totalorder %s20, 0
      %s23 = sadd.s32 %s22, 1
      %s24 = scalar_select %p21, %s22, %s23
      %p27 = pneg %p21
      %p28 = scmp.eq.s32.totalorder %s12, 1
      %p29 = por %p27, %p28
      %p30 = scmp.ne.s32.totalorder %s22, %s25
      %p31 = scmp.eq.s32.totalorder %s12, 0
      %p32 = por %p30, %p31
      %p33 = scmp.ne.s32.totalorder %s22, %s25
      %p34 = scmp.eq.s32.totalorder %s17, 1
      %p35 = por %p33, %p34
      %p36 = scmp.ne.s32.totalorder %s25, %s26
      %p37 = scmp.eq.s32.totalorder %s17, 0
      %p38 = por %p36, %p37
      %p39 = scmp.ne.s32.totalorder %s25, %s26
      %p40 = scmp.eq.s32.totalorder %s18, 1
      %p41 = por %p39, %p40
      %p43 = scmp.ne.s32.totalorder %s26, %s42
      %p44 = scmp.eq.s32.totalorder %s18, 0
      %p45 = por %p43, %p44
      %s47 = sadd.s32 %s46, 1
      %p50 = scmp.eq.s32.totalorder %s12, 1
      %p51 = scmp.ne.s32.totalorder %s46, %s48
      %p52 = scmp.eq.s32.totalorder %s12, 0
      %p53 = por %p51, %p52
      %p54 = scmp.ne.s32.totalorder %s46, %s48
      %p55 = scmp.eq.s32.totalorder %s17, 1
      %p56 = por %p54, %p55
      %p57 = scmp.ne.s32.totalorder %s48, %s49
      %p58 = scmp.eq.s32.totalorder %s17, 0
      %p59 = por %p57, %p58
      %p60 = scmp.ne.s32.totalorder %s48, %s49
      %p61 = scmp.eq.s32.totalorder %s18, 1
      %p62 = por %p60, %p61
      %p64 = scmp.ne.s32.totalorder %s49, %s63
      %p65 = scmp.eq.s32.totalorder %s18, 0
      %p66 = por %p64, %p65
      %s68 = sadd.s32 %s67, 1
      %p71 = scmp.eq.s32.totalorder %s12, 1
      %p72 = scmp.ne.s32.totalorder %s67, %s69
      %p73 = scmp.eq.s32.totalorder %s12, 0
      %p74 = por %p72, %p73
      %p75 = scmp.ne.s32.totalorder %s67, %s69
      %p76 = scmp.eq.s32.totalorder %s17, 1
      %p77 = por %p75, %p76
      %p78 = scmp.ne.s32.totalorder %s69, %s70
      %p79 = scmp.eq.s32.totalorder %s17, 0
      %p80 = por %p78, %p79
      %p81 = scmp.ne.s32.totalorder %s69, %s70
      %p82 = scmp.eq.s32.totalorder %s18, 1
      %p83 = por %p81, %p82
      %p85 = scmp.ne.s32.totalorder %s70, %s84
      %p86 = scmp.eq.s32.totalorder %s18, 0
      %p87 = por %p85, %p86
      %s88 = ssub.s32 %s12, %s19
      %p89 = scmp.eq.s32.totalorder %s88, 0
      %s91 = sadd.s32 %s90, 1
      %s92 = scalar_select %p89, %s90, %s91
      %p95 = pneg %p89
      %p96 = scmp.eq.s32.totalorder %s12, 1
      %p97 = por %p95, %p96
      %p98 = scmp.ne.s32.totalorder %s90, %s93
      %p99 = scmp.eq.s32.totalorder %s12, 0
      %p100 = por %p98, %p99
      %p101 = scmp.ne.s32.totalorder %s90, %s93
      %p102 = scmp.eq.s32.totalorder %s17, 1
      %p103 = por %p101, %p102
      %p104 = scmp.ne.s32.totalorder %s93, %s94
      %p105 = scmp.eq.s32.totalorder %s17, 0
      %p106 = por %p104, %p105
      %p107 = scmp.ne.s32.totalorder %s93, %s94
      %p108 = scmp.eq.s32.totalorder %s18, 1
      %p109 = por %p107, %p108
      %p111 = scmp.ne.s32.totalorder %s94, %s110
      %p112 = scmp.eq.s32.totalorder %s18, 0
      %p113 = por %p111, %p112
      %p114 = scmp.le.s32.totalorder 1, %s12
      %p115 = scmp.lt.s32.totalorder %s12, 3
      %p116 = pnand %p114, %p115
      %p117 = pneg %p116
      // Predicated region
      $region9: #{tpu_custom_call.1} parent=5 // pred_check
        _
      $region10: #{tpu_custom_call.1} parent=5 // pred_check_branch
        %119 = sbr.rel (%p116) target = $region12
      $region11: #{tpu_custom_call.1} parent=5 // pred_region
        %s120 = ssub.s32 %s12, 1
        // Predicated region
        $region13: #{tpu_custom_call.1} parent=11 // pred_check
          %p121 = pneg %p59
        $region14: #{tpu_custom_call.1} parent=11 // pred_check_branch
          %123 = sbr.rel (%p121) target = $region16
        $region15: #{tpu_custom_call.1} parent=11 // pred_region
          _
        $region16: #{tpu_custom_call.1} parent=11 // pred_fallthru
          _
        // Predicated region
        $region17: #{tpu_custom_call.1} parent=11 // pred_check
          %p124 = pneg %p80
        $region18: #{tpu_custom_call.1} parent=11 // pred_check_branch
          %126 = sbr.rel (%p124) target = $region20
        $region19: #{tpu_custom_call.1} parent=11 // pred_region
          _
        $region20: #{tpu_custom_call.1} parent=11 // pred_fallthru
          _
      $region12: #{tpu_custom_call.1} parent=5 // pred_fallthru
        _
      %p127 = scmp.lt.s32.totalorder %s12, 2
      // Predicated region
      $region21: #{tpu_custom_call.1} parent=5 // pred_check
        %p128 = pneg %p127
      $region22: #{tpu_custom_call.1} parent=5 // pred_check_branch
        %130 = sbr.rel (%p128) target = $region24
      $region23: #{tpu_custom_call.1} parent=5 // pred_region
        // Predicated region
        $region25: #{tpu_custom_call.1} parent=23 // pred_check
          %p131 = pneg %p32
        $region26: #{tpu_custom_call.1} parent=23 // pred_check_branch
          %133 = sbr.rel (%p131) target = $region28
        $region27: #{tpu_custom_call.1} parent=23 // pred_region
          %p134 = scmp.lt.s32.totalorder %s12, 1
          %s135 = scalar_select %p134, %s12, 1
          %s136 = smul.addr %s135, 32
          %s137 = smul.addr %s136, 4
          %s138 = scalar_lea.vmem %s0, %s137
        $region28: #{tpu_custom_call.1} parent=23 // pred_fallthru
          _
      $region24: #{tpu_custom_call.1} parent=5 // pred_fallthru
        _
      %p139 = scmp.le.s32.totalorder 1, %s12
      %p140 = scmp.lt.s32.totalorder %s12, 3
      %p141 = pnand %p139, %p140
      %p142 = pneg %p141
      // Predicated region
      $region29: #{tpu_custom_call.1} parent=5 // pred_check
        _
      $region30: #{tpu_custom_call.1} parent=5 // pred_check_branch
        %144 = sbr.rel (%p141) target = $region32
      $region31: #{tpu_custom_call.1} parent=5 // pred_region
        %s145 = ssub.s32 %s12, 1
        %p146 = scmp.lt.s32.totalorder %s17, 1
        %s147 = scalar_select %p146, %s17, 1
        %s148 = smul.addr %s147, 32
        %s149 = smul.addr %s148, 4
        %s150 = scalar_lea.vmem %s0, %s149
        %p151 = pneg %p38
        %p152 = pneg %p35
        %p153 = pneg %p59
        %p154 = pneg %p56
        %p155 = pneg %p80
        %p156 = pneg %p77
        %p157 = pneg %p106
        %p158 = pneg %p103
        %s159 = sand.u32 %s93, 1
        %s160 = scalar_lea.sflag [#allocation3], %s159
        %s161 = sand.u32 %s93, 1
        %s162 = scalar_lea.vmem [#allocation2], %s161
        %p163 = scmp.lt.s32.totalorder %s17, 1
        %s164 = scalar_select %p163, %s17, 1
        %s165 = smul.addr %s164, 32
        %s166 = smul.addr %s165, 4
        %s167 = scalar_lea.vmem %s0, %s166
        %v169 = vld [vmem:[%s167] sm:$0xf]
        %v170 = vld [vmem:[%s167 + $0x4] sm:$0xf]
        %v171 = vld [vmem:[%s167 + $0x8] sm:$0xf]
        %v172 = vld [vmem:[%s167 + $0xc] sm:$0xf]
        %v173 = vld [vmem:[%s167 + $0x10] sm:$0xf]
        %v174 = vld [vmem:[%s167 + $0x14] sm:$0xf]
        %v175 = vld [vmem:[%s167 + $0x18] sm:$0xf]
        %v176 = vld [vmem:[%s167 + $0x1c] sm:$0xf]
        %v177 = vld [vmem:[%s167 + $0x20] sm:$0xf]
        %v178 = vld [vmem:[%s167 + $0x24] sm:$0xf]
        %v179 = vld [vmem:[%s167 + $0x28] sm:$0xf]
        %v180 = vld [vmem:[%s167 + $0x2c] sm:$0xf]
        %v181 = vld [vmem:[%s167 + $0x30] sm:$0xf]
        %v182 = vld [vmem:[%s167 + $0x34] sm:$0xf]
        %v183 = vld [vmem:[%s167 + $0x38] sm:$0xf]
        %v184 = vld [vmem:[%s167 + $0x3c] sm:$0xf]
        %v185 = vld [vmem:[%s167 + $0x40] sm:$0xf]
        %v186 = vld [vmem:[%s167 + $0x44] sm:$0xf]
        %v187 = vld [vmem:[%s167 + $0x48] sm:$0xf]
        %v188 = vld [vmem:[%s167 + $0x4c] sm:$0xf]
        %v189 = vld [vmem:[%s167 + $0x50] sm:$0xf]
        %v190 = vld [vmem:[%s167 + $0x54] sm:$0xf]
        %v191 = vld [vmem:[%s167 + $0x58] sm:$0xf]
        %v192 = vld [vmem:[%s167 + $0x5c] sm:$0xf]
        %v193 = vld [vmem:[%s167 + $0x60] sm:$0xf]
        %v194 = vld [vmem:[%s167 + $0x64] sm:$0xf]
        %v195 = vld [vmem:[%s167 + $0x68] sm:$0xf]
        %v196 = vld [vmem:[%s167 + $0x6c] sm:$0xf]
        %v197 = vld [vmem:[%s167 + $0x70] sm:$0xf]
        %v198 = vld [vmem:[%s167 + $0x74] sm:$0xf]
        %v199 = vld [vmem:[%s167 + $0x78] sm:$0xf]
        %v200 = vld [vmem:[%s167 + $0x7c] sm:$0xf]
        %v201 = vld [vmem:[%s1] sm:$0xf]
        %v202 = vld [vmem:[%s1 + $0x4] sm:$0xf]
        %v203 = vld [vmem:[%s1 + $0x8] sm:$0xf]
        %v204 = vld [vmem:[%s1 + $0xc] sm:$0xf]
        %v205 = vld [vmem:[%s1 + $0x10] sm:$0x3]
        %v206 = vld [vmem:[%s2] sm:$0x1]
        %v208 = vlaneseq
        %v209 = vshrl.u32 %v208, 7
        %v210 = vsub.s32 0, %v209
        %v211 = vrot.slane %v206, %v210
        %v245 = vunpack.c.l.b16 %v169
        %v246 = vunpack.c.l.b16 %v170
        %v247 = vunpack.c.l.b16 %v171
        %v248 = vunpack.c.l.b16 %v172
        %v249 = vunpack.c.l.b16 %v173
        %v250 = vunpack.c.l.b16 %v174
        %v251 = vunpack.c.l.b16 %v175
        %v252 = vunpack.c.l.b16 %v176
        %v253 = vunpack.c.l.b16 %v177
        %v254 = vunpack.c.l.b16 %v178
        %v255 = vunpack.c.l.b16 %v179
        %v256 = vunpack.c.l.b16 %v180
        %v257 = vunpack.c.l.b16 %v181
        %v258 = vunpack.c.l.b16 %v182
        %v259 = vunpack.c.l.b16 %v183
        %v260 = vunpack.c.l.b16 %v184
        %v261 = vunpack.c.l.b16 %v185
        %v262 = vunpack.c.l.b16 %v186
        %v263 = vunpack.c.l.b16 %v187
        %v264 = vunpack.c.l.b16 %v188
        %v265 = vunpack.c.l.b16 %v189
        %v266 = vunpack.c.l.b16 %v190
        %v267 = vunpack.c.l.b16 %v191
        %v268 = vunpack.c.l.b16 %v192
        %v269 = vunpack.c.l.b16 %v193
        %v270 = vunpack.c.l.b16 %v194
        %v271 = vunpack.c.l.b16 %v195
        %v272 = vunpack.c.l.b16 %v196
        %v273 = vunpack.c.l.b16 %v197
        %v274 = vunpack.c.l.b16 %v198
        %v275 = vunpack.c.l.b16 %v199
        %v276 = vunpack.c.l.b16 %v200
        %v277 = vpack.c.b16 %v246, %v245
        %v278 = vpack.c.b16 %v248, %v247
        %v279 = vpack.c.b16 %v250, %v249
        %v280 = vpack.c.b16 %v252, %v251
        %v281 = vpack.c.b16 %v254, %v253
        %v282 = vpack.c.b16 %v256, %v255
        %v283 = vpack.c.b16 %v258, %v257
        %v284 = vpack.c.b16 %v260, %v259
        %v285 = vpack.c.b16 %v262, %v261
        %v286 = vpack.c.b16 %v264, %v263
        %v287 = vpack.c.b16 %v266, %v265
        %v288 = vpack.c.b16 %v268, %v267
        %v289 = vpack.c.b16 %v270, %v269
        %v290 = vpack.c.b16 %v272, %v271
        %v291 = vpack.c.b16 %v274, %v273
        %v292 = vpack.c.b16 %v276, %v275
        %v298 = vunpack.c.l.b16 %v201
        %v299 = vunpack.c.l.b16 %v202
        %v300 = vunpack.c.l.b16 %v203
        %v301 = vunpack.c.l.b16 %v204
        %v302 = vunpack.c.l.b16 %v205
        %v303 = vpack.c.b16 %v299, %v298
        %v304 = vpack.c.b16 %v301, %v300
        %v305 = vpack.c.b16 %v302, %v302
        %vm308 = vcmask 293888
        %v310 = vsel %vm308, %v277, 0
        %v313 = vsel %vm308, %v278, 0
        %v316 = vsel %vm308, %v279, 0
        %v319 = vsel %vm308, %v280, 0
        %v322 = vsel %vm308, %v281, 0
        %v325 = vsel %vm308, %v282, 0
        %v328 = vsel %vm308, %v283, 0
        %v331 = vsel %vm308, %v284, 0
        %v334 = vsel %vm308, %v285, 0
        %v337 = vsel %vm308, %v286, 0
        %v340 = vsel %vm308, %v287, 0
        %v343 = vsel %vm308, %v288, 0
        %v346 = vsel %vm308, %v289, 0
        %v349 = vsel %vm308, %v290, 0
        %v352 = vsel %vm308, %v291, 0
        %v355 = vsel %vm308, %v292, 0
        %vm357 = vcmask 1041408
        %v359 = vsel %vm357, %v305, 0
        %361 = vmatprep.subr.bf16.mxu0 0
        %362 = vmatpush1.bf16.msra.mxu0 0
        %363 = vmatprep.subr.bf16.mxu0 0
        %364 = vmatpush1.bf16.msra.mxu0 0
        %365 = vmatprep.subr.bf16.mxu0 0
        %366 = vmatpush1.bf16.msra.mxu0 0
        %367 = vmatprep.subr.bf16.mxu0 0
        %368 = vmatpush1.bf16.msra.mxu0 0
        %369 = vmatprep.subr.bf16.mxu0 0
        %370 = vmatpush1.bf16.msra.mxu0 0
        %371 = vmatprep.subr.bf16.mxu0 0
        %372 = vmatpush1.bf16.msra.mxu0 %v359
        %373 = vmatprep.subr.bf16.mxu0 0
        %374 = vmatpush1.bf16.msra.mxu0 %v304
        %375 = vmatprep.subr.bf16.mxu0 0
        %376 = vmatpush1.bf16.msra.mxu0 %v303
        %377 = vmatprep.subr.bf16.mxu0 0
        %378 = vmatpush2.bf16.msra.mxu0 0
        %379 = vmatprep.subr.bf16.mxu0 0
        %380 = vmatpush2.bf16.msra.mxu0 0
        %381 = vmatprep.subr.bf16.mxu0 0
        %382 = vmatpush2.bf16.msra.mxu0 0
        %383 = vmatprep.subr.bf16.mxu0 0
        %384 = vmatpush2.bf16.msra.mxu0 0
        %385 = vmatprep.subr.bf16.mxu0 0
        %386 = vmatpush2.bf16.msra.mxu0 0
        %387 = vmatprep.subr.bf16.mxu0 0
        %388 = vmatpush2.bf16.msra.mxu0 0
        %389 = vmatprep.subr.bf16.mxu0 0
        %390 = vmatpush2.bf16.msra.mxu0 0
        %391 = vmatprep.subr.bf16.mxu0 0
        %392 = vmatpush2.bf16.msra.mxu0 0
        %393 = vmatprep.mubr.bf16.mxu0 0
        %394 = vmatmul.mubr.bf16.gmra.mxu0 %v310
        %v395 = vpop.f32.mrf.mxu0
        %v396 = vadd.f32 %v211, %v395
        %v397 = vpop.f32.mrf.mxu0
        %v398 = vpop.f32.mrf.mxu0
        %v399 = vadd.f32 %v211, %v398
        %v400 = vpop.f32.mrf.mxu0
        %401 = vmatprep.mubr.bf16.mxu0 0
        %402 = vmatmul.mubr.bf16.gmra.mxu0 %v313
        %v403 = vpop.f32.mrf.mxu0
        %v404 = vadd.f32 %v211, %v403
        %v405 = vpop.f32.mrf.mxu0
        %v406 = vpop.f32.mrf.mxu0
        %v407 = vadd.f32 %v211, %v406
        %v408 = vpop.f32.mrf.mxu0
        %409 = vmatprep.mubr.bf16.mxu0 0
        %410 = vmatmul.mubr.bf16.gmra.mxu0 %v316
        %v411 = vpop.f32.mrf.mxu0
        %v412 = vadd.f32 %v211, %v411
        %v413 = vpop.f32.mrf.mxu0
        %v414 = vpop.f32.mrf.mxu0
        %v415 = vadd.f32 %v211, %v414
        %v416 = vpop.f32.mrf.mxu0
        %417 = vmatprep.mubr.bf16.mxu0 0
        %418 = vmatmul.mubr.bf16.gmra.mxu0 %v319
        %v419 = vpop.f32.mrf.mxu0
        %v420 = vadd.f32 %v211, %v419
        %v421 = vpop.f32.mrf.mxu0
        %v422 = vpop.f32.mrf.mxu0
        %v423 = vadd.f32 %v211, %v422
        %v424 = vpop.f32.mrf.mxu0
        %425 = vmatprep.mubr.bf16.mxu0 0
        %426 = vmatmul.mubr.bf16.gmra.mxu0 %v322
        %v427 = vpop.f32.mrf.mxu0
        %v428 = vadd.f32 %v211, %v427
        %v429 = vpop.f32.mrf.mxu0
        %v430 = vpop.f32.mrf.mxu0
        %v431 = vadd.f32 %v211, %v430
        %v432 = vpop.f32.mrf.mxu0
        %433 = vmatprep.mubr.bf16.mxu0 0
        %434 = vmatmul.mubr.bf16.gmra.mxu0 %v325
        %v435 = vpop.f32.mrf.mxu0
        %v436 = vadd.f32 %v211, %v435
        %v437 = vpop.f32.mrf.mxu0
        %v438 = vpop.f32.mrf.mxu0
        %v439 = vadd.f32 %v211, %v438
        %v440 = vpop.f32.mrf.mxu0
        %441 = vmatprep.mubr.bf16.mxu0 0
        %442 = vmatmul.mubr.bf16.gmra.mxu0 %v328
        %v443 = vpop.f32.mrf.mxu0
        %v444 = vadd.f32 %v211, %v443
        %v445 = vpop.f32.mrf.mxu0
        %v446 = vpop.f32.mrf.mxu0
        %v447 = vadd.f32 %v211, %v446
        %v448 = vpop.f32.mrf.mxu0
        %449 = vmatprep.mubr.bf16.mxu0 0
        %450 = vmatmul.mubr.bf16.gmra.mxu0 %v331
        %v451 = vpop.f32.mrf.mxu0
        %v452 = vadd.f32 %v211, %v451
        %v453 = vpop.f32.mrf.mxu0
        %v454 = vpop.f32.mrf.mxu0
        %v455 = vadd.f32 %v211, %v454
        %v456 = vpop.f32.mrf.mxu0
        %457 = vmatprep.mubr.bf16.mxu0 0
        %458 = vmatmul.mubr.bf16.gmra.mxu0 %v334
        %v459 = vpop.f32.mrf.mxu0
        %v460 = vadd.f32 %v211, %v459
        %v461 = vpop.f32.mrf.mxu0
        %v462 = vpop.f32.mrf.mxu0
        %v463 = vadd.f32 %v211, %v462
        %v464 = vpop.f32.mrf.mxu0
        %465 = vmatprep.mubr.bf16.mxu0 0
        %466 = vmatmul.mubr.bf16.gmra.mxu0 %v337
        %v467 = vpop.f32.mrf.mxu0
        %v468 = vadd.f32 %v211, %v467
        %v469 = vpop.f32.mrf.mxu0
        %v470 = vpop.f32.mrf.mxu0
        %v471 = vadd.f32 %v211, %v470
        %v472 = vpop.f32.mrf.mxu0
        %473 = vmatprep.mubr.bf16.mxu0 0
        %474 = vmatmul.mubr.bf16.gmra.mxu0 %v340
        %v475 = vpop.f32.mrf.mxu0
        %v476 = vadd.f32 %v211, %v475
        %v477 = vpop.f32.mrf.mxu0
        %v478 = vpop.f32.mrf.mxu0
        %v479 = vadd.f32 %v211, %v478
        %v480 = vpop.f32.mrf.mxu0
        %481 = vmatprep.mubr.bf16.mxu0 0
        %482 = vmatmul.mubr.bf16.gmra.mxu0 %v343
        %v483 = vpop.f32.mrf.mxu0
        %v484 = vadd.f32 %v211, %v483
        %v485 = vpop.f32.mrf.mxu0
        %v486 = vpop.f32.mrf.mxu0
        %v487 = vadd.f32 %v211, %v486
        %v488 = vpop.f32.mrf.mxu0
        %489 = vmatprep.mubr.bf16.mxu0 0
        %490 = vmatmul.mubr.bf16.gmra.mxu0 %v346
        %v491 = vpop.f32.mrf.mxu0
        %v492 = vadd.f32 %v211, %v491
        %v493 = vpop.f32.mrf.mxu0
        %v494 = vpop.f32.mrf.mxu0
        %v495 = vadd.f32 %v211, %v494
        %v496 = vpop.f32.mrf.mxu0
        %497 = vmatprep.mubr.bf16.mxu0 0
        %498 = vmatmul.mubr.bf16.gmra.mxu0 %v349
        %v499 = vpop.f32.mrf.mxu0
        %v500 = vadd.f32 %v211, %v499
        %v501 = vpop.f32.mrf.mxu0
        %v502 = vpop.f32.mrf.mxu0
        %v503 = vadd.f32 %v211, %v502
        %v504 = vpop.f32.mrf.mxu0
        %505 = vmatprep.mubr.bf16.mxu0 0
        %506 = vmatmul.mubr.bf16.gmra.mxu0 %v352
        %v507 = vpop.f32.mrf.mxu0
        %v508 = vadd.f32 %v211, %v507
        %v509 = vpop.f32.mrf.mxu0
        %v510 = vpop.f32.mrf.mxu0
        %v511 = vadd.f32 %v211, %v510
        %v512 = vpop.f32.mrf.mxu0
        %513 = vmatprep.mubr.bf16.mxu0 0
        %514 = vmatmul.mubr.bf16.gmra.mxu0 %v355
        %v515 = vpop.f32.mrf.mxu0
        %v516 = vadd.f32 %v211, %v515
        %v517 = vpop.f32.mrf.mxu0
        %v518 = vpop.f32.mrf.mxu0
        %v519 = vadd.f32 %v211, %v518
        %v520 = vpop.f32.mrf.mxu0
        %521 = vdwg.mxu0
        %v522 = vmax.f32 %v396, 0.0
        %v523 = vmax.f32 %v399, 0.0
        %v524 = vmax.f32 %v404, 0.0
        %v525 = vmax.f32 %v407, 0.0
        %v526 = vmax.f32 %v412, 0.0
        %v527 = vmax.f32 %v415, 0.0
        %v528 = vmax.f32 %v420, 0.0
        %v529 = vmax.f32 %v423, 0.0
        %v530 = vmax.f32 %v428, 0.0
        %v531 = vmax.f32 %v431, 0.0
        %v532 = vmax.f32 %v436, 0.0
        %v533 = vmax.f32 %v439, 0.0
        %v534 = vmax.f32 %v444, 0.0
        %v535 = vmax.f32 %v447, 0.0
        %v536 = vmax.f32 %v452, 0.0
        %v537 = vmax.f32 %v455, 0.0
        %v538 = vmax.f32 %v460, 0.0
        %v539 = vmax.f32 %v463, 0.0
        %v540 = vmax.f32 %v468, 0.0
        %v541 = vmax.f32 %v471, 0.0
        %v542 = vmax.f32 %v476, 0.0
        %v543 = vmax.f32 %v479, 0.0
        %v544 = vmax.f32 %v484, 0.0
        %v545 = vmax.f32 %v487, 0.0
        %v546 = vmax.f32 %v492, 0.0
        %v547 = vmax.f32 %v495, 0.0
        %v548 = vmax.f32 %v500, 0.0
        %v549 = vmax.f32 %v503, 0.0
        %v550 = vmax.f32 %v508, 0.0
        %v551 = vmax.f32 %v511, 0.0
        %v552 = vmax.f32 %v516, 0.0
        %v553 = vmax.f32 %v519, 0.0
        %v554 = vadd.f32 %v522, %v523
        %v555 = vadd.f32 %v554, %v524
        %v556 = vadd.f32 %v555, %v525
        %v557 = vadd.f32 %v556, %v526
        %v558 = vadd.f32 %v557, %v527
        %v559 = vadd.f32 %v558, %v528
        %v560 = vadd.f32 %v559, %v529
        %v561 = vadd.f32 %v560, %v530
        %v562 = vadd.f32 %v561, %v531
        %v563 = vadd.f32 %v562, %v532
        %v564 = vadd.f32 %v563, %v533
        %v565 = vadd.f32 %v564, %v534
        %v566 = vadd.f32 %v565, %v535
        %v567 = vadd.f32 %v566, %v536
        %v568 = vadd.f32 %v567, %v537
        %v569 = vadd.f32 %v568, %v538
        %v570 = vadd.f32 %v569, %v539
        %v571 = vadd.f32 %v570, %v540
        %v572 = vadd.f32 %v571, %v541
        %v573 = vadd.f32 %v572, %v542
        %v574 = vadd.f32 %v573, %v543
        %v575 = vadd.f32 %v574, %v544
        %v576 = vadd.f32 %v575, %v545
        %v577 = vadd.f32 %v576, %v546
        %v578 = vadd.f32 %v577, %v547
        %v579 = vadd.f32 %v578, %v548
        %v580 = vadd.f32 %v579, %v549
        %v581 = vadd.f32 %v580, %v550
        %v582 = vadd.f32 %v581, %v551
        %v583 = vadd.f32 %v582, %v552
        %v584 = vadd.f32 %v583, %v553
        %v585 = vrot.slane %v584, 4
        %v586 = vadd.f32 %v584, %v585
        %v587 = vrot.slane %v586, 2
        %v588 = vadd.f32 %v586, %v587
        %v589 = vrot.slane %v588, 1
        %v590 = vadd.f32 %v588, %v589
        %v591 = vmul.f32 %v590, 0.00390625
        %592 = vst [vmem:[%s162] sm:$0x1] %v591
        %s593 = sand.u32 %s93, 1
        %s594 = scalar_lea.sflag [#allocation3], %s593
        %s595 = sand.u32 %s93, 1
        %s596 = scalar_lea.vmem [#allocation2], %s595
        // Predicated region
        $region33: #{tpu_custom_call.1} parent=31 // pred_check
          %p597 = pneg %p103
        $region34: #{tpu_custom_call.1} parent=31 // pred_check_branch
          %599 = sbr.rel (%p597) target = $region36
        $region35: #{tpu_custom_call.1} parent=31 // pred_region
          %s601 = ssub.s32 16, 16
          %602 = vsyncadd %s594, %s601
          %s603 = smul.addr %s17, 16
          %s604 = scalar_lea.hbm %s3, %s603
          %s606 = sshll.u32 %s596, 4
          %s607 = int_to_ptr.vmem [resolvable:$true] %s606
          %609 = dma.vmem_to_hbm [thread:$0]  %s607, 16, %s604, %s594
        $region36: #{tpu_custom_call.1} parent=31 // pred_fallthru
          _
      $region32: #{tpu_custom_call.1} parent=5 // pred_fallthru
        _
      %p610 = scmp.le.s32.totalorder 2, %s12
      // Predicated region
      $region37: #{tpu_custom_call.1} parent=5 // pred_check
        %p611 = pneg %p610
      $region38: #{tpu_custom_call.1} parent=5 // pred_check_branch
        %613 = sbr.rel (%p611) target = $region40
      $region39: #{tpu_custom_call.1} parent=5 // pred_region
        %s614 = ssub.s32 %s12, 2
        // Predicated region
        $region41: #{tpu_custom_call.1} parent=39 // pred_check
          %p615 = pneg %p109
        $region42: #{tpu_custom_call.1} parent=39 // pred_check_branch
          %617 = sbr.rel (%p615) target = $region44
        $region43: #{tpu_custom_call.1} parent=39 // pred_region
          %s618 = sand.u32 %s94, 1
          %s619 = scalar_lea.sflag [#allocation3], %s618
          %s620 = sand.u32 %s94, 1
          %s621 = scalar_lea.vmem [#allocation2], %s620
          %622 = dma.done %s619, 16
        $region44: #{tpu_custom_call.1} parent=39 // pred_fallthru
          _
      $region40: #{tpu_custom_call.1} parent=5 // pred_fallthru
        _
    $region6: #{tpu_custom_call.1} parent=1 // loop_footer
      %s16 = sadd.s32 1, %s12
    $region7: #{tpu_custom_call.1} parent=1 // loop_footer_branch
      %11 = sbr.rel target = $region3
    $region8: #{tpu_custom_call.1} parent=1 // loop_exit
      _
    %623 = vsyncpa [#allocation3], 1
    %s624 = scalar_lea.sflag [#allocation3], 1
    %625 = vsyncpa %s624, 1

</llo_original>
